<compile_context>
chip_gen: v7x
topology: tpu7x:2x2x1
jax: 0.10.0
libtpu: 0.0.40
codegen_flags: <defaults>
</compile_context>

<pallas_src>
import functools

import jax
import jax.numpy as jnp
from jax.experimental import pallas as pl
from jax.experimental.pallas import tpu as pltpu


def _round_up(x, m):
    return ((x + m - 1) // m) * m


def _cdiv(a, b):
    return -(-a // b)


def _ppo_actor_kernel(act_limit_ref, obs_ref, w1_ref, b1_ref, w23_ref, b23_ref,
                      mean_ref):
    """Fused actor head: mean = tanh(tanh(obs@W1+b1) @ W23 + b23) * act_limit."""
    cdt = w1_ref.dtype                # MXU operand dtype (bf16 or f32)
    act_limit = act_limit_ref[0, 0]   # SMEM scalar

    x = obs_ref[...]                                                   # [TB, obs_dim]

    # actor_body layer 0: Linear + Tanh (f32 accumulation on the MXU).
    h1 = jnp.tanh(
        jnp.dot(x, w1_ref[...], preferred_element_type=jnp.float32)
        + b1_ref[...])                                                 # [TB, h1] f32

    # Fused (actor_body layer 1 [Identity] + actor_mean): Linear + Tanh, scale.
    mean = jnp.tanh(
        jnp.dot(h1.astype(cdt), w23_ref[...],
                preferred_element_type=jnp.float32)
        + b23_ref[...]) * act_limit                                    # [TB, act_dim]
    mean_ref[...] = mean.astype(mean_ref.dtype)


@functools.partial(jax.jit, static_argnames=("block_b", "compute_dtype"))
def ppo_agent_forward(obs, params, act_limit=1.0, *, block_b=2048,
                      compute_dtype=jnp.bfloat16):
    """Returns (mean, std) parameterizing the Normal of PPOAgent_Raw.forward(obs).

    std has shape (act_dim,) and broadcasts against mean (exactly what
    Normal(mean, std) does after logstd.expand_as(mean) in the PyTorch module).
    """
    w1, b1, w2, b2, w3, b3, logstd = params
    B, obs_dim = obs.shape
    h1d = w1.shape[1]
    act_dim = w3.shape[1]

    # --- Algebraic layer-2/3 fusion (valid ONLY because actor_body's second
    # layer activation is Identity). Done once, in f32, in the wrapper. ---
    w2f, w3f = w2.astype(jnp.float32), w3.astype(jnp.float32)
    w23 = w2f @ w3f                                                    # [h1, act_dim]
    b23 = b2.astype(jnp.float32) @ w3f + b3.astype(jnp.float32)        # [1, act_dim]

    # --- Batch tiling: at most 2 grid steps (keeps both v7x TCs busy; on
    # single-TC v5e/v6e the extra step is ~0.35us, negligible). ---
    tb = min(block_b, _round_up(_cdiv(B, 2), 8))
    b_pad = _round_up(B, tb)
    obs_p = jnp.pad(obs, ((0, b_pad - B), (0, 0))) if b_pad != B else obs

    # --- MXU operand dtype (bf16 default on v6e/v7x; biases stay f32). ---
    if compute_dtype != jnp.float32:
        obs_p = obs_p.astype(compute_dtype)
        w1c = w1.astype(compute_dtype)
        w23c = w23.astype(compute_dtype)
    else:
        obs_p = obs_p.astype(jnp.float32)
        w1c = w1.astype(jnp.float32)
        w23c = w23
    b1f = b1.astype(jnp.float32)
    b23f = b23

    act_limit_arr = jnp.asarray(act_limit, jnp.float32).reshape(1, 1)

    grid = (b_pad // tb,)
    const = lambda i: (0, 0)          # weights/biases: DMA once, VMEM-resident
    in_specs = [
        pl.BlockSpec(memory_space=pltpu.MemorySpace.SMEM),     # act_limit scalar
        pl.BlockSpec((tb, obs_dim), lambda i: (i, 0)),         # obs batch tile
        pl.BlockSpec(w1c.shape, const),
        pl.BlockSpec(b1f.shape, const),
        pl.BlockSpec(w23c.shape, const),
        pl.BlockSpec(b23f.shape, const),
    ]
    # Unpadded, act_dim-wide output block -> no 16x padded writeback, no
    # follow-up slice kernel over lanes.
    out_specs = pl.BlockSpec((tb, act_dim), lambda i: (i, 0))
    out_shape = jax.ShapeDtypeStruct((b_pad, act_dim), jnp.float32)

    flops = 2 * b_pad * (obs_dim * h1d + h1d * act_dim)
    transcendentals = b_pad * (h1d + act_dim)
    bytes_accessed = (
        obs_p.size * obs_p.dtype.itemsize
        + sum(a.size * a.dtype.itemsize for a in (w1c, b1f, w23c, b23f))
        + b_pad * act_dim * 4)

    mean_pad = pl.pallas_call(
        _ppo_actor_kernel,
        out_shape=out_shape,
        grid=grid,
        in_specs=in_specs,
        out_specs=out_specs,
        compiler_params=pltpu.CompilerParams(
            dimension_semantics=("parallel",)),
        cost_estimate=pl.CostEstimate(
            flops=flops,
            transcendentals=transcendentals,
            bytes_accessed=bytes_accessed),
    )(act_limit_arr, obs_p, w1c, b1f, w23c, b23f)

    mean = mean_pad if b_pad == B else mean_pad[:B]
    # std = exp(log_std) does not depend on obs; compact (act_dim,) vector,
    # broadcasts inside Normal(mean, std) exactly like logstd.expand_as(mean).
    std = jnp.exp(logstd.astype(jnp.float32))
    return mean, std


def init_params(key, obs_dim, act_dim, actor_sizes):
    """Deterministic parameter init (shapes mirror PPOAgent_Raw.__init__)."""
    h1, h2 = actor_sizes
    ks = jax.random.split(key, 6)

    def lin(kw, kb, fan_in, fan_out):
        # PyTorch-style uniform(-1/sqrt(fan_in), 1/sqrt(fan_in)); stored [in, out]
        bound = 1.0 / jnp.sqrt(fan_in)
        w = jax.random.uniform(kw, (fan_in, fan_out), jnp.float32, -bound, bound)
        b = jax.random.uniform(kb, (1, fan_out), jnp.float32, -bound, bound)
        return w, b

    w1, b1 = lin(ks[0], ks[1], obs_dim, h1)        # actor_body Linear 0
    w2, b2 = lin(ks[2], ks[3], h1, h2)             # actor_body Linear 1
    w3, b3 = lin(ks[4], ks[5], h2, act_dim)        # actor_mean Linear
    logstd = jnp.zeros((act_dim,), jnp.float32)    # nn.Parameter(torch.zeros(act_dim))
    return (w1, b1, w2, b2, w3, b3, logstd)


if __name__ == "__main__":
    # Small shapes consistent with the module; B=256 exercises the 2-step
    # batch-tiled grid (2 tiles of 128 rows).
    B, obs_dim, act_dim = 256, 32, 8
    actor_sizes = (64, 64)
    act_limit = 1.0

    key = jax.random.PRNGKey(0)
    k_obs, k_par = jax.random.split(key)
    obs = jax.random.normal(k_obs, (B, obs_dim), jnp.float32)
    params = init_params(k_par, obs_dim, act_dim, actor_sizes)

    # Reference in plain JAX (un-fused, mirrors the PyTorch layer structure).
    w1, b1, w2, b2, w3, b3, logstd = params
    h1 = jnp.tanh(obs @ w1 + b1)
    h2 = h1 @ w2 + b2                               # Identity activation
    mean_ref = jnp.tanh(h2 @ w3 + b3) * act_limit
    std_ref = jnp.exp(logstd)

    # Default path: bf16 MXU operands, f32 accumulation/biases/tanh.
    mean, std = ppo_agent_forward(obs, params, act_limit)
    jax.block_until_ready((mean, std))
    assert mean.shape == (B, act_dim) and std.shape == (act_dim,)
    assert jnp.allclose(mean, mean_ref, atol=5e-2, rtol=5e-2), "mean mismatch (bf16)"
    assert jnp.allclose(std, std_ref, atol=1e-6), "std mismatch"

    # Full-f32 path: tight check (only fp non-associativity from the w2@w3 fold).
    mean_f32, std_f32 = ppo_agent_forward(obs, params, act_limit,
                                          compute_dtype=jnp.float32)
    jax.block_until_ready(mean_f32)
    assert jnp.allclose(mean_f32, mean_ref, atol=1e-4), "mean mismatch (f32)"
    assert jnp.allclose(std_f32, std_ref, atol=1e-6), "std mismatch (f32)"

    # TODO(synk): Normal.sample()/log_prob in .act() use host-side RNG in PyTorch;
    # the kernel exposes the distribution parameters (mean, std), matching
    # forward(). The critic head (get_value) is not part of forward().
    print("KERNEL_OK")
</pallas_src>

<mosaic_0001>
module attributes {stable_mosaic.version = 11 : i64} {
  func.func @_ppo_actor_kernel(%arg0: i32, %arg1: memref<1x1xf32, #tpu.memory_space<smem>>, %arg2: memref<128x32xbf16, #tpu.memory_space<vmem>>, %arg3: memref<32x64xbf16, #tpu.memory_space<vmem>>, %arg4: memref<1x64xf32, #tpu.memory_space<vmem>>, %arg5: memref<64x8xbf16, #tpu.memory_space<vmem>>, %arg6: memref<1x8xf32, #tpu.memory_space<vmem>>, %arg7: memref<128x8xf32, #tpu.memory_space<vmem>>) attributes {dimension_semantics = [#tpu.dimension_semantics<parallel>], iteration_bounds = array<i64: 2>, scalar_prefetch = 0 : i64, scratch_operands = 0 : i64, tpu.core_type = #tpu.core_type<tc>, window_params = [{transform_indices = @transform_0, window_bounds = array<i64: 1, 1>}, {transform_indices = @transform_1, window_bounds = array<i64: 128, 32>}, {pipeline_mode = #tpu.pipeline_mode<synchronous>, transform_indices = @transform_2, window_bounds = array<i64: 32, 64>}, {pipeline_mode = #tpu.pipeline_mode<synchronous>, transform_indices = @transform_3, window_bounds = array<i64: 1, 64>}, {pipeline_mode = #tpu.pipeline_mode<synchronous>, transform_indices = @transform_4, window_bounds = array<i64: 64, 8>}, {pipeline_mode = #tpu.pipeline_mode<synchronous>, transform_indices = @transform_5, window_bounds = array<i64: 1, 8>}, {transform_indices = @transform_6, window_bounds = array<i64: 128, 8>}]} {
    %c0 = arith.constant 0 : index
    %c0_0 = arith.constant 0 : index
    %0 = memref.load %arg1[%c0, %c0_0] : memref<1x1xf32, #tpu.memory_space<smem>>
    %c0_1 = arith.constant 0 : index
    %c0_2 = arith.constant 0 : index
    %1 = vector.load %arg2[%c0_1, %c0_2] : memref<128x32xbf16, #tpu.memory_space<vmem>>, vector<128x32xbf16>
    %c0_3 = arith.constant 0 : index
    %c0_4 = arith.constant 0 : index
    %2 = vector.load %arg3[%c0_3, %c0_4] : memref<32x64xbf16, #tpu.memory_space<vmem>>, vector<32x64xbf16>
    %cst = arith.constant dense<0.000000e+00> : vector<128x64xf32>
    %3 = tpu.matmul %1, %2, %cst {dimension_numbers = #tpu.dot_dimension_numbers<[1], [0], [0], [1], [0, 0, 1, 1], [], []>} : vector<128x32xbf16>, vector<32x64xbf16>, vector<128x64xf32> -> vector<128x64xf32>
    %c0_5 = arith.constant 0 : index
    %c0_6 = arith.constant 0 : index
    %4 = vector.load %arg4[%c0_5, %c0_6] : memref<1x64xf32, #tpu.memory_space<vmem>>, vector<1x64xf32>
    %5 = vector.broadcast %4 : vector<1x64xf32> to vector<128x64xf32>
    %6 = arith.addf %3, %5 : vector<128x64xf32>
    %7 = math.tanh %6 : vector<128x64xf32>
    %8 = arith.truncf %7 : vector<128x64xf32> to vector<128x64xbf16>
    %c0_7 = arith.constant 0 : index
    %c0_8 = arith.constant 0 : index
    %9 = vector.load %arg5[%c0_7, %c0_8] : memref<64x8xbf16, #tpu.memory_space<vmem>>, vector<64x8xbf16>
    %cst_9 = arith.constant dense<0.000000e+00> : vector<128x8xf32>
    %10 = tpu.matmul %8, %9, %cst_9 {dimension_numbers = #tpu.dot_dimension_numbers<[1], [0], [0], [1], [0, 0, 1, 1], [], []>} : vector<128x64xbf16>, vector<64x8xbf16>, vector<128x8xf32> -> vector<128x8xf32>
    %c0_10 = arith.constant 0 : index
    %c0_11 = arith.constant 0 : index
    %11 = vector.load %arg6[%c0_10, %c0_11] : memref<1x8xf32, #tpu.memory_space<vmem>>, vector<1x8xf32>
    %12 = vector.broadcast %11 : vector<1x8xf32> to vector<128x8xf32>
    %13 = arith.addf %10, %12 : vector<128x8xf32>
    %14 = math.tanh %13 : vector<128x8xf32>
    %15 = vector.broadcast %0 : f32 to vector<128x8xf32>
    %16 = arith.mulf %14, %15 : vector<128x8xf32>
    %c0_12 = arith.constant 0 : index
    %c0_13 = arith.constant 0 : index
    %17 = vector.load %arg7[%c0_12, %c0_13] : memref<128x8xf32, #tpu.memory_space<vmem>>, vector<128x8xf32>
    tpu.vector_store %arg7[%c0_12, %c0_13], %16 {strides = array<i32>} : memref<128x8xf32, #tpu.memory_space<vmem>>, vector<128x8xf32>,
    return
  }
  func.func @transform_0(%arg0: i32) -> (i32, i32) {
    %c0_i32 = arith.constant 0 : i32
    %c0_i32_0 = arith.constant 0 : i32
    %c0_i32_1 = arith.constant 0 : i32
    return %c0_i32, %c0_i32_0 : i32, i32
  }
  func.func @transform_1(%arg0: i32) -> (i32, i32) {
    %c0_i32 = arith.constant 0 : i32
    %c0_i32_0 = arith.constant 0 : i32
    return %arg0, %c0_i32 : i32, i32
  }
  func.func @transform_2(%arg0: i32) -> (i32, i32) {
    %c0_i32 = arith.constant 0 : i32
    %c0_i32_0 = arith.constant 0 : i32
    %c0_i32_1 = arith.constant 0 : i32
    return %c0_i32, %c0_i32_0 : i32, i32
  }
  func.func @transform_3(%arg0: i32) -> (i32, i32) {
    %c0_i32 = arith.constant 0 : i32
    %c0_i32_0 = arith.constant 0 : i32
    %c0_i32_1 = arith.constant 0 : i32
    return %c0_i32, %c0_i32_0 : i32, i32
  }
  func.func @transform_4(%arg0: i32) -> (i32, i32) {
    %c0_i32 = arith.constant 0 : i32
    %c0_i32_0 = arith.constant 0 : i32
    %c0_i32_1 = arith.constant 0 : i32
    return %c0_i32, %c0_i32_0 : i32, i32
  }
  func.func @transform_5(%arg0: i32) -> (i32, i32) {
    %c0_i32 = arith.constant 0 : i32
    %c0_i32_0 = arith.constant 0 : i32
    %c0_i32_1 = arith.constant 0 : i32
    return %c0_i32, %c0_i32_0 : i32, i32
  }
  func.func @transform_6(%arg0: i32) -> (i32, i32) {
    %c0_i32 = arith.constant 0 : i32
    %c0_i32_0 = arith.constant 0 : i32
    return %arg0, %c0_i32 : i32, i32
  }
}

</mosaic_0001>

<llo_original>
// kernel: ppo_agent_forward.1
$region0: #{ppo_agent_forward.1}
  #allocation0 [shape = 'u32[]', space=smem, size = 0x4, offset = 0x4, fixed_abs, tag = 'smem constant byte address 0x4 - core index']
  #allocation1 [shape = 'u32[144,128]{1,0:T(1,128)}', space=vmem, size = 0x12000, scoped, tag = 'internal scratch']
  #allocation2 [shape = 'f32[1,1]{1,0:T(1,128)S(6)}', space=smem, size = 0x200, scoped, tag = 'scoped memory for ppo_agent_forward.1']
  %s0 = inlined_call_operand.<no memory space> [shape: f32[1,1], index: 0, kind: input, shape index: {}]
  %s1 = inlined_call_operand.vmem [shape: bf16[256,32], index: 1, kind: input, shape index: {}]
  %s2 = inlined_call_operand.vmem [shape: bf16[32,64], index: 2, kind: input, shape index: {}]
  %s3 = inlined_call_operand.vmem [shape: f32[1,64], index: 3, kind: input, shape index: {}]
  %s4 = inlined_call_operand.vmem [shape: bf16[64,8], index: 4, kind: input, shape index: {}]
  %s5 = inlined_call_operand.vmem [shape: f32[1,8], index: 5, kind: input, shape index: {}]
  %s6 = inlined_call_operand.vmem [shape: f32[256,8], index: 6, kind: output, shape index: {}]
  %s7 = sld [smem:[#allocation0]]
  $region57: #{ppo_agent_forward.1} parent=0
    _
  %s9 = ssub.s32 1, %s7
  %s10 = scalar_select 0, %s9, %s7
  %11 = sst [smem:[#allocation2]] %s0
  loop: start=0, step=1, limit=4
  $region2: #{ppo_agent_forward.1} parent=0 // loop_pre_header
    _
  $region3: #{ppo_agent_forward.1} parent=0 // loop_header
    %s13 = sphi 0, %s17
    %p14 = scmp.ge.s32.totalorder %s13, 4
    %s21 = sphi 0, %s21
    %s23 = sphi 0, %s21
    %s24 = sphi 0, %s23
    %s38 = sphi 0, %s24
    %s44 = sphi 0, %s46
    %s47 = sphi 0, %s44
    %s48 = sphi 0, %s47
    %s64 = sphi 0, %s48
    %s68 = sphi 0, %s68
    %s70 = sphi 0, %s68
    %s71 = sphi 0, %s70
    %s85 = sphi 0, %s71
    %s89 = sphi 0, %s89
    %s91 = sphi 0, %s89
    %s92 = sphi 0, %s91
    %s106 = sphi 0, %s92
    %s110 = sphi 0, %s110
    %s112 = sphi 0, %s110
    %s113 = sphi 0, %s112
    %s127 = sphi 0, %s113
    %s131 = sphi 0, %s131
    %s133 = sphi 0, %s131
    %s134 = sphi 0, %s133
    %s148 = sphi 0, %s134
    %s154 = sphi 0, %s156
    %s157 = sphi 0, %s154
    %s158 = sphi 0, %s157
    %s174 = sphi 0, %s158
  $region4: #{ppo_agent_forward.1} parent=0 // loop_header_branch
    %16 = sbr.rel (%p14) target = $region8
  $region5: #{ppo_agent_forward.1} parent=0 // loop_body
    %s18 = ssub.s32 %s13, 1
    %s19 = ssub.s32 %s13, 2
    %s20 = sadd.s32 %s13, 1
    %s22 = sadd.s32 %s21, 1
    %p25 = scmp.eq.s32.totalorder %s13, 1
    %p26 = scmp.ne.s32.totalorder %s21, %s23
    %p27 = scmp.eq.s32.totalorder %s13, 0
    %p28 = por %p26, %p27
    %p29 = scmp.ne.s32.totalorder %s21, %s23
    %p30 = scmp.eq.s32.totalorder %s18, 1
    %p31 = por %p29, %p30
    %p32 = scmp.ne.s32.totalorder %s23, %s24
    %p33 = scmp.eq.s32.totalorder %s18, 0
    %p34 = por %p32, %p33
    %p35 = scmp.ne.s32.totalorder %s23, %s24
    %p36 = scmp.eq.s32.totalorder %s19, 1
    %p37 = por %p35, %p36
    %p39 = scmp.ne.s32.totalorder %s24, %s38
    %p40 = scmp.eq.s32.totalorder %s19, 0
    %p41 = por %p39, %p40
    %s42 = ssub.s32 %s13, %s20
    %p43 = scmp.eq.s32.totalorder %s42, 0
    %s45 = sadd.s32 %s44, 1
    %s46 = scalar_select %p43, %s44, %s45
    %p49 = pneg %p43
    %p50 = scmp.eq.s32.totalorder %s13, 1
    %p51 = por %p49, %p50
    %p52 = scmp.ne.s32.totalorder %s44, %s47
    %p53 = scmp.eq.s32.totalorder %s13, 0
    %p54 = por %p52, %p53
    %p55 = scmp.ne.s32.totalorder %s44, %s47
    %p56 = scmp.eq.s32.totalorder %s18, 1
    %p57 = por %p55, %p56
    %p58 = scmp.ne.s32.totalorder %s47, %s48
    %p59 = scmp.eq.s32.totalorder %s18, 0
    %p60 = por %p58, %p59
    %p61 = scmp.ne.s32.totalorder %s47, %s48
    %p62 = scmp.eq.s32.totalorder %s19, 1
    %p63 = por %p61, %p62
    %p65 = scmp.ne.s32.totalorder %s48, %s64
    %p66 = scmp.eq.s32.totalorder %s19, 0
    %p67 = por %p65, %p66
    %s69 = sadd.s32 %s68, 1
    %p72 = scmp.eq.s32.totalorder %s13, 1
    %p73 = scmp.ne.s32.totalorder %s68, %s70
    %p74 = scmp.eq.s32.totalorder %s13, 0
    %p75 = por %p73, %p74
    %p76 = scmp.ne.s32.totalorder %s68, %s70
    %p77 = scmp.eq.s32.totalorder %s18, 1
    %p78 = por %p76, %p77
    %p79 = scmp.ne.s32.totalorder %s70, %s71
    %p80 = scmp.eq.s32.totalorder %s18, 0
    %p81 = por %p79, %p80
    %p82 = scmp.ne.s32.totalorder %s70, %s71
    %p83 = scmp.eq.s32.totalorder %s19, 1
    %p84 = por %p82, %p83
    %p86 = scmp.ne.s32.totalorder %s71, %s85
    %p87 = scmp.eq.s32.totalorder %s19, 0
    %p88 = por %p86, %p87
    %s90 = sadd.s32 %s89, 1
    %p93 = scmp.eq.s32.totalorder %s13, 1
    %p94 = scmp.ne.s32.totalorder %s89, %s91
    %p95 = scmp.eq.s32.totalorder %s13, 0
    %p96 = por %p94, %p95
    %p97 = scmp.ne.s32.totalorder %s89, %s91
    %p98 = scmp.eq.s32.totalorder %s18, 1
    %p99 = por %p97, %p98
    %p100 = scmp.ne.s32.totalorder %s91, %s92
    %p101 = scmp.eq.s32.totalorder %s18, 0
    %p102 = por %p100, %p101
    %p103 = scmp.ne.s32.totalorder %s91, %s92
    %p104 = scmp.eq.s32.totalorder %s19, 1
    %p105 = por %p103, %p104
    %p107 = scmp.ne.s32.totalorder %s92, %s106
    %p108 = scmp.eq.s32.totalorder %s19, 0
    %p109 = por %p107, %p108
    %s111 = sadd.s32 %s110, 1
    %p114 = scmp.eq.s32.totalorder %s13, 1
    %p115 = scmp.ne.s32.totalorder %s110, %s112
    %p116 = scmp.eq.s32.totalorder %s13, 0
    %p117 = por %p115, %p116
    %p118 = scmp.ne.s32.totalorder %s110, %s112
    %p119 = scmp.eq.s32.totalorder %s18, 1
    %p120 = por %p118, %p119
    %p121 = scmp.ne.s32.totalorder %s112, %s113
    %p122 = scmp.eq.s32.totalorder %s18, 0
    %p123 = por %p121, %p122
    %p124 = scmp.ne.s32.totalorder %s112, %s113
    %p125 = scmp.eq.s32.totalorder %s19, 1
    %p126 = por %p124, %p125
    %p128 = scmp.ne.s32.totalorder %s113, %s127
    %p129 = scmp.eq.s32.totalorder %s19, 0
    %p130 = por %p128, %p129
    %s132 = sadd.s32 %s131, 1
    %p135 = scmp.eq.s32.totalorder %s13, 1
    %p136 = scmp.ne.s32.totalorder %s131, %s133
    %p137 = scmp.eq.s32.totalorder %s13, 0
    %p138 = por %p136, %p137
    %p139 = scmp.ne.s32.totalorder %s131, %s133
    %p140 = scmp.eq.s32.totalorder %s18, 1
    %p141 = por %p139, %p140
    %p142 = scmp.ne.s32.totalorder %s133, %s134
    %p143 = scmp.eq.s32.totalorder %s18, 0
    %p144 = por %p142, %p143
    %p145 = scmp.ne.s32.totalorder %s133, %s134
    %p146 = scmp.eq.s32.totalorder %s19, 1
    %p147 = por %p145, %p146
    %p149 = scmp.ne.s32.totalorder %s134, %s148
    %p150 = scmp.eq.s32.totalorder %s19, 0
    %p151 = por %p149, %p150
    %s152 = ssub.s32 %s13, %s20
    %p153 = scmp.eq.s32.totalorder %s152, 0
    %s155 = sadd.s32 %s154, 1
    %s156 = scalar_select %p153, %s154, %s155
    %p159 = pneg %p153
    %p160 = scmp.eq.s32.totalorder %s13, 1
    %p161 = por %p159, %p160
    %p162 = scmp.ne.s32.totalorder %s154, %s157
    %p163 = scmp.eq.s32.totalorder %s13, 0
    %p164 = por %p162, %p163
    %p165 = scmp.ne.s32.totalorder %s154, %s157
    %p166 = scmp.eq.s32.totalorder %s18, 1
    %p167 = por %p165, %p166
    %p168 = scmp.ne.s32.totalorder %s157, %s158
    %p169 = scmp.eq.s32.totalorder %s18, 0
    %p170 = por %p168, %p169
    %p171 = scmp.ne.s32.totalorder %s157, %s158
    %p172 = scmp.eq.s32.totalorder %s19, 1
    %p173 = por %p171, %p172
    %p175 = scmp.ne.s32.totalorder %s158, %s174
    %p176 = scmp.eq.s32.totalorder %s19, 0
    %p177 = por %p175, %p176
    %p178 = scmp.le.s32.totalorder 1, %s13
    %p179 = scmp.lt.s32.totalorder %s13, 3
    %p180 = pnand %p178, %p179
    %p181 = pneg %p180
    // Predicated region
    $region9: #{ppo_agent_forward.1} parent=5 // pred_check
      _
    $region10: #{ppo_agent_forward.1} parent=5 // pred_check_branch
      %183 = sbr.rel (%p180) target = $region12
    $region11: #{ppo_agent_forward.1} parent=5 // pred_region
      %s184 = ssub.s32 %s13, 1
      // Predicated region
      $region13: #{ppo_agent_forward.1} parent=11 // pred_check
        %p185 = pneg %p34
      $region14: #{ppo_agent_forward.1} parent=11 // pred_check_branch
        %187 = sbr.rel (%p185) target = $region16
      $region15: #{ppo_agent_forward.1} parent=11 // pred_region
        _
      $region16: #{ppo_agent_forward.1} parent=11 // pred_fallthru
        _
      // Predicated region
      $region17: #{ppo_agent_forward.1} parent=11 // pred_check
        %p188 = pneg %p81
      $region18: #{ppo_agent_forward.1} parent=11 // pred_check_branch
        %190 = sbr.rel (%p188) target = $region20
      $region19: #{ppo_agent_forward.1} parent=11 // pred_region
        _
      $region20: #{ppo_agent_forward.1} parent=11 // pred_fallthru
        _
      // Predicated region
      $region21: #{ppo_agent_forward.1} parent=11 // pred_check
        %p191 = pneg %p102
      $region22: #{ppo_agent_forward.1} parent=11 // pred_check_branch
        %193 = sbr.rel (%p191) target = $region24
      $region23: #{ppo_agent_forward.1} parent=11 // pred_region
        _
      $region24: #{ppo_agent_forward.1} parent=11 // pred_fallthru
        _
      // Predicated region
      $region25: #{ppo_agent_forward.1} parent=11 // pred_check
        %p194 = pneg %p123
      $region26: #{ppo_agent_forward.1} parent=11 // pred_check_branch
        %196 = sbr.rel (%p194) target = $region28
      $region27: #{ppo_agent_forward.1} parent=11 // pred_region
        _
      $region28: #{ppo_agent_forward.1} parent=11 // pred_fallthru
        _
      // Predicated region
      $region29: #{ppo_agent_forward.1} parent=11 // pred_check
        %p197 = pneg %p144
      $region30: #{ppo_agent_forward.1} parent=11 // pred_check_branch
        %199 = sbr.rel (%p197) target = $region32
      $region31: #{ppo_agent_forward.1} parent=11 // pred_region
        _
      $region32: #{ppo_agent_forward.1} parent=11 // pred_fallthru
        _
    $region12: #{ppo_agent_forward.1} parent=5 // pred_fallthru
      _
    %p200 = scmp.lt.s32.totalorder %s13, 2
    // Predicated region
    $region33: #{ppo_agent_forward.1} parent=5 // pred_check
      %p201 = pneg %p200
    $region34: #{ppo_agent_forward.1} parent=5 // pred_check_branch
      %203 = sbr.rel (%p201) target = $region36
    $region35: #{ppo_agent_forward.1} parent=5 // pred_region
      // Predicated region
      $region37: #{ppo_agent_forward.1} parent=35 // pred_check
        %p204 = pneg %p54
      $region38: #{ppo_agent_forward.1} parent=35 // pred_check_branch
        %206 = sbr.rel (%p204) target = $region40
      $region39: #{ppo_agent_forward.1} parent=35 // pred_region
        %s207 = smul.u32 16, %s13
        %p208 = scmp.lt.s32.totalorder %s207, 31
        %s209 = scalar_select %p208, %s207, 31
        %s210 = smul.addr %s209, 4
        %s211 = scalar_lea.vmem %s1, %s210
        %s212 = smul.u32 16, %s13
      $region40: #{ppo_agent_forward.1} parent=35 // pred_fallthru
        _
    $region36: #{ppo_agent_forward.1} parent=5 // pred_fallthru
      _
    %p213 = scmp.le.s32.totalorder 1, %s13
    %p214 = scmp.lt.s32.totalorder %s13, 3
    %p215 = pnand %p213, %p214
    %p216 = pneg %p215
    // Predicated region
    $region41: #{ppo_agent_forward.1} parent=5 // pred_check
      _
    $region42: #{ppo_agent_forward.1} parent=5 // pred_check_branch
      %218 = sbr.rel (%p215) target = $region44
    $region43: #{ppo_agent_forward.1} parent=5 // pred_region
      %s219 = ssub.s32 %s13, 1
      %p220 = pneg %p34
      %p221 = pneg %p31
      %s222 = smul.u32 16, %s18
      %p223 = scmp.lt.s32.totalorder %s222, 31
      %s224 = scalar_select %p223, %s222, 31
      %s225 = smul.addr %s224, 4
      %s226 = scalar_lea.vmem %s1, %s225
      %p227 = pneg %p60
      %p228 = pneg %p57
      %p229 = pneg %p81
      %p230 = pneg %p78
      %p231 = pneg %p102
      %p232 = pneg %p99
      %p233 = pneg %p123
      %p234 = pneg %p120
      %p235 = pneg %p144
      %p236 = pneg %p141
      %p237 = pneg %p170
      %p238 = pneg %p167
      %s239 = smul.u32 16, %s18
      %p240 = scmp.lt.s32.totalorder %s239, 31
      %s241 = scalar_select %p240, %s239, 31
      %s242 = smul.addr %s241, 8
      %s243 = scalar_lea.vmem %s6, %s242
      %s244 = smul.u32 16, %s18
      %p245 = scmp.lt.s32.totalorder %s244, 31
      %s246 = scalar_select %p245, %s244, 31
      %s247 = smul.addr %s246, 4
      %s248 = scalar_lea.vmem %s1, %s247
      %s249 = smul.u32 16, %s18
      %s250 = smul.u32 16, %s18
      %p251 = scmp.lt.s32.totalorder %s250, 31
      %s252 = scalar_select %p251, %s250, 31
      %s253 = smul.addr %s252, 8
      %s254 = scalar_lea.vmem %s6, %s253
      %s255 = smul.u32 16, %s18
      %s257 = sld [smem:[#allocation2]]
      %v258 = vld [vmem:[%s248] sm:$0xf]
      %v259 = vld [vmem:[%s248 + $0x4] sm:$0xf]
      %v260 = vld [vmem:[%s248 + $0x8] sm:$0xf]
      %v261 = vld [vmem:[%s248 + $0xc] sm:$0xf]
      %v262 = vld [vmem:[%s248 + $0x10] sm:$0xf]
      %v263 = vld [vmem:[%s248 + $0x14] sm:$0xf]
      %v264 = vld [vmem:[%s248 + $0x18] sm:$0xf]
      %v265 = vld [vmem:[%s248 + $0x1c] sm:$0xf]
      %v266 = vld [vmem:[%s248 + $0x20] sm:$0xf]
      %v267 = vld [vmem:[%s248 + $0x24] sm:$0xf]
      %v268 = vld [vmem:[%s248 + $0x28] sm:$0xf]
      %v269 = vld [vmem:[%s248 + $0x2c] sm:$0xf]
      %v270 = vld [vmem:[%s248 + $0x30] sm:$0xf]
      %v271 = vld [vmem:[%s248 + $0x34] sm:$0xf]
      %v272 = vld [vmem:[%s248 + $0x38] sm:$0xf]
      %v273 = vld [vmem:[%s248 + $0x3c] sm:$0xf]
      %v274 = vld [vmem:[%s2] sm:$0xf]
      %v275 = vld [vmem:[%s2 + $0x4] sm:$0xf]
      %v276 = vld [vmem:[%s2 + $0x8] sm:$0xf]
      %v277 = vld [vmem:[%s2 + $0xc] sm:$0xf]
      %v278 = vld [vmem:[%s3] sm:$0x1]
      %v280 = vlaneseq
      %v281 = vshrl.u32 %v280, 7
      %v282 = vsub.s32 0, %v281
      %v283 = vrot.slane %v278, %v282
      %v301 = vunpack.c.l.b16 %v258
      %v302 = vunpack.c.l.b16 %v259
      %v303 = vunpack.c.l.b16 %v260
      %v304 = vunpack.c.l.b16 %v261
      %v305 = vunpack.c.l.b16 %v262
      %v306 = vunpack.c.l.b16 %v263
      %v307 = vunpack.c.l.b16 %v264
      %v308 = vunpack.c.l.b16 %v265
      %v309 = vunpack.c.l.b16 %v266
      %v310 = vunpack.c.l.b16 %v267
      %v311 = vunpack.c.l.b16 %v268
      %v312 = vunpack.c.l.b16 %v269
      %v313 = vunpack.c.l.b16 %v270
      %v314 = vunpack.c.l.b16 %v271
      %v315 = vunpack.c.l.b16 %v272
      %v316 = vunpack.c.l.b16 %v273
      %v317 = vpack.c.b16 %v302, %v301
      %v318 = vpack.c.b16 %v304, %v303
      %v319 = vpack.c.b16 %v306, %v305
      %v320 = vpack.c.b16 %v308, %v307
      %v321 = vpack.c.b16 %v310, %v309
      %v322 = vpack.c.b16 %v312, %v311
      %v323 = vpack.c.b16 %v314, %v313
      %v324 = vpack.c.b16 %v316, %v315
      %v329 = vunpack.c.l.b16 %v274
      %v330 = vunpack.c.l.b16 %v275
      %v331 = vunpack.c.l.b16 %v276
      %v332 = vunpack.c.l.b16 %v277
      %v333 = vpack.c.b16 %v330, %v329
      %v334 = vpack.c.b16 %v332, %v331
      %vm337 = vcmask 261120
      %v339 = vsel %vm337, %v317, 0
      %v342 = vsel %vm337, %v318, 0
      %v345 = vsel %vm337, %v319, 0
      %v348 = vsel %vm337, %v320, 0
      %v351 = vsel %vm337, %v321, 0
      %v354 = vsel %vm337, %v322, 0
      %v357 = vsel %vm337, %v323, 0
      %v360 = vsel %vm337, %v324, 0
      %362 = vmatprep.subr.bf16.mxu0 0
      %363 = vmatpush1.bf16.msra.mxu0 %v333
      %364 = vmatprep.subr.bf16.mxu0 0
      %365 = vmatpush1.bf16.msra.mxu0 %v334
      %366 = vmatprep.subr.bf16.mxu0 0
      %367 = vmatpush1.bf16.msra.mxu0 0
      %368 = vmatprep.subr.bf16.mxu0 0
      %369 = vmatpush1.bf16.msra.mxu0 0
      %370 = vmatprep.subr.bf16.mxu0 0
      %371 = vmatpush1.bf16.msra.mxu0 0
      %372 = vmatprep.subr.bf16.mxu0 0
      %373 = vmatpush1.bf16.msra.mxu0 0
      %374 = vmatprep.subr.bf16.mxu0 0
      %375 = vmatpush1.bf16.msra.mxu0 0
      %376 = vmatprep.subr.bf16.mxu0 0
      %377 = vmatpush1.bf16.msra.mxu0 0
      %378 = vmatprep.subr.bf16.mxu0 0
      %379 = vmatpush1.bf16.msra.mxu0 0
      %380 = vmatprep.subr.bf16.mxu0 0
      %381 = vmatpush1.bf16.msra.mxu0 0
      %382 = vmatprep.subr.bf16.mxu0 0
      %383 = vmatpush1.bf16.msra.mxu0 0
      %384 = vmatprep.subr.bf16.mxu0 0
      %385 = vmatpush1.bf16.msra.mxu0 0
      %386 = vmatprep.subr.bf16.mxu0 0
      %387 = vmatpush1.bf16.msra.mxu0 0
      %388 = vmatprep.subr.bf16.mxu0 0
      %389 = vmatpush1.bf16.msra.mxu0 0
      %390 = vmatprep.subr.bf16.mxu0 0
      %391 = vmatpush1.bf16.msra.mxu0 0
      %392 = vmatprep.subr.bf16.mxu0 0
      %393 = vmatpush1.bf16.msra.mxu0 0
      %394 = vmatprep.mubr.bf16.mxu0 0
      %395 = vmatmul.mubr.bf16.gmra.mrb[0].mxu0 %v339
      %v396 = vpop.f32.mrb[0].mxu0
      %v397 = vadd.f32 %v283, %v396
      %v398 = vpop.f32.mrb[0].mxu0
      %v399 = vpop.f32.mrb[0].mxu0
      %v400 = vadd.f32 %v283, %v399
      %v401 = vpop.f32.mrb[0].mxu0
      %402 = vmatprep.mubr.bf16.mxu0 0
      %403 = vmatmul.mubr.bf16.gmra.mrb[0].mxu0 %v342
      %v404 = vpop.f32.mrb[0].mxu0
      %v405 = vadd.f32 %v283, %v404
      %v406 = vpop.f32.mrb[0].mxu0
      %v407 = vpop.f32.mrb[0].mxu0
      %v408 = vadd.f32 %v283, %v407
      %v409 = vpop.f32.mrb[0].mxu0
      %410 = vmatprep.mubr.bf16.mxu0 0
      %411 = vmatmul.mubr.bf16.gmra.mrb[0].mxu0 %v345
      %v412 = vpop.f32.mrb[0].mxu0
      %v413 = vadd.f32 %v283, %v412
      %v414 = vpop.f32.mrb[0].mxu0
      %v415 = vpop.f32.mrb[0].mxu0
      %v416 = vadd.f32 %v283, %v415
      %v417 = vpop.f32.mrb[0].mxu0
      %418 = vmatprep.mubr.bf16.mxu0 0
      %419 = vmatmul.mubr.bf16.gmra.mrb[0].mxu0 %v348
      %v420 = vpop.f32.mrb[0].mxu0
      %v421 = vadd.f32 %v283, %v420
      %v422 = vpop.f32.mrb[0].mxu0
      %v423 = vpop.f32.mrb[0].mxu0
      %v424 = vadd.f32 %v283, %v423
      %v425 = vpop.f32.mrb[0].mxu0
      %426 = vmatprep.mubr.bf16.mxu0 0
      %427 = vmatmul.mubr.bf16.gmra.mrb[0].mxu0 %v351
      %v428 = vpop.f32.mrb[0].mxu0
      %v429 = vadd.f32 %v283, %v428
      %v430 = vpop.f32.mrb[0].mxu0
      %v431 = vpop.f32.mrb[0].mxu0
      %v432 = vadd.f32 %v283, %v431
      %v433 = vpop.f32.mrb[0].mxu0
      %434 = vmatprep.mubr.bf16.mxu0 0
      %435 = vmatmul.mubr.bf16.gmra.mrb[0].mxu0 %v354
      %v436 = vpop.f32.mrb[0].mxu0
      %v437 = vadd.f32 %v283, %v436
      %v438 = vpop.f32.mrb[0].mxu0
      %v439 = vpop.f32.mrb[0].mxu0
      %v440 = vadd.f32 %v283, %v439
      %v441 = vpop.f32.mrb[0].mxu0
      %442 = vmatprep.mubr.bf16.mxu0 0
      %443 = vmatmul.mubr.bf16.gmra.mrb[0].mxu0 %v357
      %v444 = vpop.f32.mrb[0].mxu0
      %v445 = vadd.f32 %v283, %v444
      %v446 = vpop.f32.mrb[0].mxu0
      %v447 = vpop.f32.mrb[0].mxu0
      %v448 = vadd.f32 %v283, %v447
      %v449 = vpop.f32.mrb[0].mxu0
      %450 = vmatprep.mubr.bf16.mxu0 0
      %451 = vmatmul.mubr.bf16.gmra.mrb[0].mxu0 %v360
      %v452 = vpop.f32.mrb[0].mxu0
      %v453 = vadd.f32 %v283, %v452
      %v454 = vpop.f32.mrb[0].mxu0
      %v455 = vpop.f32.mrb[0].mxu0
      %v456 = vadd.f32 %v283, %v455
      %v457 = vpop.f32.mrb[0].mxu0
      %458 = vdwg.mxu0
      %v459 = vtanh.pop %v397
      %v460 = vtanh.pop %v400
      %v461 = vtanh.pop %v405
      %v462 = vtanh.pop %v408
      %v463 = vtanh.pop %v413
      %v464 = vtanh.pop %v416
      %v465 = vtanh.pop %v421
      %v466 = vtanh.pop %v424
      %v467 = vtanh.pop %v429
      %v468 = vtanh.pop %v432
      %v469 = vtanh.pop %v437
      %v470 = vtanh.pop %v440
      %v471 = vtanh.pop %v445
      %v472 = vtanh.pop %v448
      %v473 = vtanh.pop %v453
      %v474 = vtanh.pop %v456
      %v475 = vpack.c.bf16 %v460, %v459
      %v476 = vpack.c.bf16 %v462, %v461
      %v477 = vpack.c.bf16 %v464, %v463
      %v478 = vpack.c.bf16 %v466, %v465
      %v479 = vpack.c.bf16 %v468, %v467
      %v480 = vpack.c.bf16 %v470, %v469
      %v481 = vpack.c.bf16 %v472, %v471
      %v482 = vpack.c.bf16 %v474, %v473
      %v483 = vld [vmem:[%s4] sm:$0xf]
      %v484 = vld [vmem:[%s4 + $0x4] sm:$0xf]
      %v485 = vld [vmem:[%s4 + $0x8] sm:$0xf]
      %v486 = vld [vmem:[%s4 + $0xc] sm:$0xf]
      %v487 = vld [vmem:[%s4 + $0x10] sm:$0xf]
      %v488 = vld [vmem:[%s4 + $0x14] sm:$0xf]
      %v489 = vld [vmem:[%s4 + $0x18] sm:$0xf]
      %v490 = vld [vmem:[%s4 + $0x1c] sm:$0xf]
      %v491 = vld [vmem:[%s5] sm:$0x1]
      %v493 = vlaneseq
      %v494 = vshrl.u32 %v493, 7
      %v495 = vsub.s32 0, %v494
      %v496 = vrot.slane %v491, %v495
      %v506 = vunpack.c.l.b16 %v483
      %v507 = vunpack.c.l.b16 %v484
      %v508 = vunpack.c.l.b16 %v485
      %v509 = vunpack.c.l.b16 %v486
      %v510 = vunpack.c.l.b16 %v487
      %v511 = vunpack.c.l.b16 %v488
      %v512 = vunpack.c.l.b16 %v489
      %v513 = vunpack.c.l.b16 %v490
      %v514 = vpack.c.b16 %v507, %v506
      %v515 = vpack.c.b16 %v509, %v508
      %v516 = vpack.c.b16 %v511, %v510
      %v517 = vpack.c.b16 %v513, %v512
      %vm522 = vcmask 523264
      %v524 = vsel %vm522, %v475, 0
      %v527 = vsel %vm522, %v476, 0
      %v530 = vsel %vm522, %v477, 0
      %v533 = vsel %vm522, %v478, 0
      %v536 = vsel %vm522, %v479, 0
      %v539 = vsel %vm522, %v480, 0
      %v542 = vsel %vm522, %v481, 0
      %v545 = vsel %vm522, %v482, 0
      %547 = vmatprep.subr.bf16.mxu0 0
      %548 = vmatpush1.bf16.msra.mxu0 %v514
      %549 = vmatprep.subr.bf16.mxu0 0
      %550 = vmatpush1.bf16.msra.mxu0 %v515
      %551 = vmatprep.subr.bf16.mxu0 0
      %552 = vmatpush1.bf16.msra.mxu0 %v516
      %553 = vmatprep.subr.bf16.mxu0 0
      %554 = vmatpush1.bf16.msra.mxu0 %v517
      %555 = vmatprep.subr.bf16.mxu0 0
      %556 = vmatpush1.bf16.msra.mxu0 0
      %557 = vmatprep.subr.bf16.mxu0 0
      %558 = vmatpush1.bf16.msra.mxu0 0
      %559 = vmatprep.subr.bf16.mxu0 0
      %560 = vmatpush1.bf16.msra.mxu0 0
      %561 = vmatprep.subr.bf16.mxu0 0
      %562 = vmatpush1.bf16.msra.mxu0 0
      %563 = vmatprep.subr.bf16.mxu0 0
      %564 = vmatpush1.bf16.msra.mxu0 0
      %565 = vmatprep.subr.bf16.mxu0 0
      %566 = vmatpush1.bf16.msra.mxu0 0
      %567 = vmatprep.subr.bf16.mxu0 0
      %568 = vmatpush1.bf16.msra.mxu0 0
      %569 = vmatprep.subr.bf16.mxu0 0
      %570 = vmatpush1.bf16.msra.mxu0 0
      %571 = vmatprep.subr.bf16.mxu0 0
      %572 = vmatpush1.bf16.msra.mxu0 0
      %573 = vmatprep.subr.bf16.mxu0 0
      %574 = vmatpush1.bf16.msra.mxu0 0
      %575 = vmatprep.subr.bf16.mxu0 0
      %576 = vmatpush1.bf16.msra.mxu0 0
      %577 = vmatprep.subr.bf16.mxu0 0
      %578 = vmatpush1.bf16.msra.mxu0 0
      %579 = vmatprep.mubr.bf16.mxu0 0
      %580 = vmatmul.mubr.bf16.gmra.mrb[0].mxu0 %v524
      %v581 = vpop.f32.mrb[0].mxu0
      %v582 = vadd.f32 %v496, %v581
      %v583 = vpop.f32.mrb[0].mxu0
      %v584 = vpop.f32.mrb[0].mxu0
      %v585 = vadd.f32 %v496, %v584
      %v586 = vpop.f32.mrb[0].mxu0
      %587 = vmatprep.mubr.bf16.mxu0 0
      %588 = vmatmul.mubr.bf16.gmra.mrb[0].mxu0 %v527
      %v589 = vpop.f32.mrb[0].mxu0
      %v590 = vadd.f32 %v496, %v589
      %v591 = vpop.f32.mrb[0].mxu0
      %v592 = vpop.f32.mrb[0].mxu0
      %v593 = vadd.f32 %v496, %v592
      %v594 = vpop.f32.mrb[0].mxu0
      %595 = vmatprep.mubr.bf16.mxu0 0
      %596 = vmatmul.mubr.bf16.gmra.mrb[0].mxu0 %v530
      %v597 = vpop.f32.mrb[0].mxu0
      %v598 = vadd.f32 %v496, %v597
      %v599 = vpop.f32.mrb[0].mxu0
      %v600 = vpop.f32.mrb[0].mxu0
      %v601 = vadd.f32 %v496, %v600
      %v602 = vpop.f32.mrb[0].mxu0
      %603 = vmatprep.mubr.bf16.mxu0 0
      %604 = vmatmul.mubr.bf16.gmra.mrb[0].mxu0 %v533
      %v605 = vpop.f32.mrb[0].mxu0
      %v606 = vadd.f32 %v496, %v605
      %v607 = vpop.f32.mrb[0].mxu0
      %v608 = vpop.f32.mrb[0].mxu0
      %v609 = vadd.f32 %v496, %v608
      %v610 = vpop.f32.mrb[0].mxu0
      %611 = vmatprep.mubr.bf16.mxu0 0
      %612 = vmatmul.mubr.bf16.gmra.mrb[0].mxu0 %v536
      %v613 = vpop.f32.mrb[0].mxu0
      %v614 = vadd.f32 %v496, %v613
      %v615 = vpop.f32.mrb[0].mxu0
      %v616 = vpop.f32.mrb[0].mxu0
      %v617 = vadd.f32 %v496, %v616
      %v618 = vpop.f32.mrb[0].mxu0
      %619 = vmatprep.mubr.bf16.mxu0 0
      %620 = vmatmul.mubr.bf16.gmra.mrb[0].mxu0 %v539
      %v621 = vpop.f32.mrb[0].mxu0
      %v622 = vadd.f32 %v496, %v621
      %v623 = vpop.f32.mrb[0].mxu0
      %v624 = vpop.f32.mrb[0].mxu0
      %v625 = vadd.f32 %v496, %v624
      %v626 = vpop.f32.mrb[0].mxu0
      %627 = vmatprep.mubr.bf16.mxu0 0
      %628 = vmatmul.mubr.bf16.gmra.mrb[0].mxu0 %v542
      %v629 = vpop.f32.mrb[0].mxu0
      %v630 = vadd.f32 %v496, %v629
      %v631 = vpop.f32.mrb[0].mxu0
      %v632 = vpop.f32.mrb[0].mxu0
      %v633 = vadd.f32 %v496, %v632
      %v634 = vpop.f32.mrb[0].mxu0
      %635 = vmatprep.mubr.bf16.mxu0 0
      %636 = vmatmul.mubr.bf16.gmra.mrb[0].mxu0 %v545
      %v637 = vpop.f32.mrb[0].mxu0
      %v638 = vadd.f32 %v496, %v637
      %v639 = vpop.f32.mrb[0].mxu0
      %v640 = vpop.f32.mrb[0].mxu0
      %v641 = vadd.f32 %v496, %v640
      %v642 = vpop.f32.mrb[0].mxu0
      %643 = vdwg.mxu0
      %v644 = vtanh.pop %v582
      %v645 = vtanh.pop %v585
      %v646 = vtanh.pop %v590
      %v647 = vtanh.pop %v593
      %v648 = vtanh.pop %v598
      %v649 = vtanh.pop %v601
      %v650 = vtanh.pop %v606
      %v651 = vtanh.pop %v609
      %v652 = vtanh.pop %v614
      %v653 = vtanh.pop %v617
      %v654 = vtanh.pop %v622
      %v655 = vtanh.pop %v625
      %v656 = vtanh.pop %v630
      %v657 = vtanh.pop %v633
      %v658 = vtanh.pop %v638
      %v659 = vtanh.pop %v641
      %v660 = vstv %s257
      %v661 = vmul.f32 %v644, %v660
      %v662 = vmul.f32 %v645, %v660
      %v663 = vmul.f32 %v646, %v660
      %v664 = vmul.f32 %v647, %v660
      %v665 = vmul.f32 %v648, %v660
      %v666 = vmul.f32 %v649, %v660
      %v667 = vmul.f32 %v650, %v660
      %v668 = vmul.f32 %v651, %v660
      %v669 = vmul.f32 %v652, %v660
      %v670 = vmul.f32 %v653, %v660
      %v671 = vmul.f32 %v654, %v660
      %v672 = vmul.f32 %v655, %v660
      %v673 = vmul.f32 %v656, %v660
      %v674 = vmul.f32 %v657, %v660
      %v675 = vmul.f32 %v658, %v660
      %v676 = vmul.f32 %v659, %v660
      %vm677 = vcmask 64512
      %678 = vst.msk [vmem:[%s254] sm:$0xff] %vm677, %v661
      %679 = vst.msk [vmem:[%s254 + $0x8] sm:$0xff] %vm677, %v662
      %680 = vst.msk [vmem:[%s254 + $0x10] sm:$0xff] %vm677, %v663
      %681 = vst.msk [vmem:[%s254 + $0x18] sm:$0xff] %vm677, %v664
      %682 = vst.msk [vmem:[%s254 + $0x20] sm:$0xff] %vm677, %v665
      %683 = vst.msk [vmem:[%s254 + $0x28] sm:$0xff] %vm677, %v666
      %684 = vst.msk [vmem:[%s254 + $0x30] sm:$0xff] %vm677, %v667
      %685 = vst.msk [vmem:[%s254 + $0x38] sm:$0xff] %vm677, %v668
      %686 = vst.msk [vmem:[%s254 + $0x40] sm:$0xff] %vm677, %v669
      %687 = vst.msk [vmem:[%s254 + $0x48] sm:$0xff] %vm677, %v670
      %688 = vst.msk [vmem:[%s254 + $0x50] sm:$0xff] %vm677, %v671
      %689 = vst.msk [vmem:[%s254 + $0x58] sm:$0xff] %vm677, %v672
      %690 = vst.msk [vmem:[%s254 + $0x60] sm:$0xff] %vm677, %v673
      %691 = vst.msk [vmem:[%s254 + $0x68] sm:$0xff] %vm677, %v674
      %692 = vst.msk [vmem:[%s254 + $0x70] sm:$0xff] %vm677, %v675
      %693 = vst.msk [vmem:[%s254 + $0x78] sm:$0xff] %vm677, %v676
      %s694 = smul.u32 16, %s18
      %p695 = scmp.lt.s32.totalorder %s694, 31
      %s696 = scalar_select %p695, %s694, 31
      %s697 = smul.addr %s696, 8
      %s698 = scalar_lea.vmem %s6, %s697
      // Predicated region
      $region45: #{ppo_agent_forward.1} parent=43 // pred_check
        %p699 = pneg %p167
      $region46: #{ppo_agent_forward.1} parent=43 // pred_check_branch
        %701 = sbr.rel (%p699) target = $region48
      $region47: #{ppo_agent_forward.1} parent=43 // pred_region
        %s702 = smul.u32 16, %s18
      $region48: #{ppo_agent_forward.1} parent=43 // pred_fallthru
        _
    $region44: #{ppo_agent_forward.1} parent=5 // pred_fallthru
      _
    %p703 = scmp.le.s32.totalorder 2, %s13
    // Predicated region
    $region49: #{ppo_agent_forward.1} parent=5 // pred_check
      %p704 = pneg %p703
    $region50: #{ppo_agent_forward.1} parent=5 // pred_check_branch
      %706 = sbr.rel (%p704) target = $region52
    $region51: #{ppo_agent_forward.1} parent=5 // pred_region
      %s707 = ssub.s32 %s13, 2
      // Predicated region
      $region53: #{ppo_agent_forward.1} parent=51 // pred_check
        %p708 = pneg %p173
      $region54: #{ppo_agent_forward.1} parent=51 // pred_check_branch
        %710 = sbr.rel (%p708) target = $region56
      $region55: #{ppo_agent_forward.1} parent=51 // pred_region
        %s711 = smul.u32 16, %s19
        %p712 = scmp.lt.s32.totalorder %s711, 31
        %s713 = scalar_select %p712, %s711, 31
        %s714 = smul.addr %s713, 8
        %s715 = scalar_lea.vmem %s6, %s714
      $region56: #{ppo_agent_forward.1} parent=51 // pred_fallthru
        _
    $region52: #{ppo_agent_forward.1} parent=5 // pred_fallthru
      _
  $region6: #{ppo_agent_forward.1} parent=0 // loop_footer
    %s17 = sadd.s32 1, %s13
  $region7: #{ppo_agent_forward.1} parent=0 // loop_footer_branch
    %12 = sbr.rel target = $region3
  $region8: #{ppo_agent_forward.1} parent=0 // loop_exit
    _

</llo_original>
